<compile_context>
chip_gen: v7x
topology: tpu7x:2x2x1
jax: 0.10.0
libtpu: 0.0.40
codegen_flags: <defaults>
</compile_context>

<pallas_src>
import functools

import jax
import jax.numpy as jnp
from jax.experimental import pallas as pl
from jax.experimental.pallas import tpu as pltpu

_LANE = 128
_SUBLANE = 8


def _round_up(x: int, m: int) -> int:
    return ((x + m - 1) // m) * m


def _predict_kernel(x_ref, w_ref, b_ref, o_ref):
    # x: [TILE_B, D] f32   (pipelined per grid step)
    # w: [D, H_pad] bf16   (VMEM-resident across the grid)
    # b: [1, H_pad] f32    (VMEM-resident across the grid)
    # o: [TILE_B, H_pad] f32 (lane-dense: H_pad % 128 == 0)
    x = x_ref[...].astype(jnp.bfloat16)  # feed the MXU bf16
    w = w_ref[...]
    logits = jnp.dot(x, w, preferred_element_type=jnp.float32) + b_ref[...]
    o_ref[...] = jax.nn.sigmoid(logits).astype(o_ref.dtype)


@functools.partial(jax.jit, static_argnames=("out_features", "tile_b"))
def pallas_predict(x, w_pad, b_pad, out_features, tile_b=512):
    """Dense prediction head: sigmoid(x @ w + b) with a batch-tiled Pallas grid.

    x:     [B, D]       float32
    w_pad: [D, H_pad]   bfloat16  (H_pad is a multiple of 128; zero-padded cols)
    b_pad: [1, H_pad]   float32
    returns [B, out_features] float32
    """
    B, D = x.shape
    D_w, H_pad = w_pad.shape
    assert D == D_w and H_pad % _LANE == 0

    # Choose a row tile: largest of {tile_b, padded B} that keeps tiles aligned.
    tile_b = min(tile_b, _round_up(B, _SUBLANE))
    b_padded = _round_up(B, tile_b)
    if b_padded != B:
        x = jnp.pad(x, ((0, b_padded - B), (0, 0)))
    grid = (b_padded // tile_b,)

    # Rough VMEM budget: double-buffered x/out tiles + resident bf16 weight/bias.
    vmem_bytes = (
        2 * tile_b * D * 4        # x tiles (f32), double-buffered
        + 2 * tile_b * H_pad * 4  # out tiles (f32), double-buffered
        + 2 * D * H_pad * 2       # resident weight (bf16)
        + 2 * H_pad * 4           # resident bias (f32)
    )
    vmem_limit = min(max(vmem_bytes + (4 << 20), 32 << 20), 48 << 20)

    out = pl.pallas_call(
        _predict_kernel,
        out_shape=jax.ShapeDtypeStruct((b_padded, H_pad), jnp.float32),
        grid=grid,
        in_specs=[
            pl.BlockSpec((tile_b, D), lambda i: (i, 0)),   # pipelined activations
            pl.BlockSpec((D, H_pad), lambda i: (0, 0)),    # resident weight
            pl.BlockSpec((1, H_pad), lambda i: (0, 0)),    # resident bias
        ],
        out_specs=pl.BlockSpec((tile_b, H_pad), lambda i: (i, 0)),
        compiler_params=pltpu.CompilerParams(
            dimension_semantics=("parallel",),             # megacore-shardable
            vmem_limit_bytes=vmem_limit,
        ),
    )(x, w_pad, b_pad)

    return out[:B, :out_features]


class PredictModuleJAX:
    """JAX mirror of torchrec PredictModule: dict[str, array] -> dict[str, array]."""

    def __init__(self, in_features, out_features, key, min_pallas_rows=256):
        kw, kb = jax.random.split(key)
        self.in_features = in_features
        self.out_features = out_features
        self.min_pallas_rows = min_pallas_rows

        # deterministic synthetic parameters (no checkpoint load)
        self.weight = (
            jax.random.normal(kw, (in_features, out_features), jnp.float32) * 0.05
        )
        self.bias = jax.random.normal(kb, (1, out_features), jnp.float32) * 0.01

        # Lane-dense, bf16 parameter copies for the Pallas path (built once).
        h_pad = max(_round_up(out_features, _LANE), _LANE)
        self.weight_padded = (
            jnp.zeros((in_features, h_pad), jnp.bfloat16)
            .at[:, :out_features]
            .set(self.weight.astype(jnp.bfloat16))
        )
        self.bias_padded = (
            jnp.zeros((1, h_pad), jnp.float32).at[:, :out_features].set(self.bias)
        )

    def predict_forward(self, batch):
        x = batch["float_features"]
        if x.shape[0] < self.min_pallas_rows:
            # Toy batches: pallas_call overhead dominates; XLA's fused
            # dot+sigmoid is strictly faster here.
            out = jax.nn.sigmoid(x @ self.weight + self.bias)
        else:
            out = pallas_predict(
                x, self.weight_padded, self.bias_padded, self.out_features
            )
        return {"default": out}

    def forward(self, batch):
        return self.predict_forward(batch)

    __call__ = forward


if __name__ == "__main__":
    key = jax.random.PRNGKey(0)
    k_in, k_mod = jax.random.split(key)

    B, D, H = 64, 32, 16  # small shapes consistent with a dense prediction head
    batch = {"float_features": jax.random.normal(k_in, (B, D), jnp.float32)}

    # Force the Pallas path (min_pallas_rows=1) so the kernel runs and is checked.
    module = PredictModuleJAX(in_features=D, out_features=H, key=k_mod,
                              min_pallas_rows=1)
    out = module(batch)["default"]
    jax.block_until_ready(out)

    # f32 reference; tolerance loosened because the kernel feeds the MXU bf16.
    ref = jax.nn.sigmoid(batch["float_features"] @ module.weight + module.bias)
    assert out.shape == (B, H)
    assert jnp.allclose(out, ref, atol=2e-2, rtol=2e-2), float(
        jnp.max(jnp.abs(out - ref))
    )

    # Also exercise the tiny-batch fallback (plain XLA) path.
    module_fb = PredictModuleJAX(in_features=D, out_features=H, key=k_mod)
    out_fb = module_fb(batch)["default"]
    jax.block_until_ready(out_fb)
    assert jnp.allclose(out_fb, ref, atol=1e-5, rtol=1e-5)

    print("KERNEL_OK")
</pallas_src>

<mosaic_0001>
module attributes {stable_mosaic.version = 11 : i64} {
  func.func @_predict_kernel(%arg0: i32, %arg1: memref<64x32xf32, #tpu.memory_space<vmem>>, %arg2: memref<32x128xbf16, #tpu.memory_space<vmem>>, %arg3: memref<1x128xf32, #tpu.memory_space<vmem>>, %arg4: memref<64x128xf32, #tpu.memory_space<vmem>>) attributes {dimension_semantics = [#tpu.dimension_semantics<parallel>], iteration_bounds = array<i64: 1>, scalar_prefetch = 0 : i64, scratch_operands = 0 : i64, tpu.core_type = #tpu.core_type<tc>, window_params = [{transform_indices = @transform_0, window_bounds = array<i64: 64, 32>}, {pipeline_mode = #tpu.pipeline_mode<synchronous>, transform_indices = @transform_1, window_bounds = array<i64: 32, 128>}, {pipeline_mode = #tpu.pipeline_mode<synchronous>, transform_indices = @transform_2, window_bounds = array<i64: 1, 128>}, {transform_indices = @transform_3, window_bounds = array<i64: 64, 128>}]} {
    %c0 = arith.constant 0 : index
    %c0_0 = arith.constant 0 : index
    %0 = vector.load %arg1[%c0, %c0_0] : memref<64x32xf32, #tpu.memory_space<vmem>>, vector<64x32xf32>
    %1 = arith.truncf %0 : vector<64x32xf32> to vector<64x32xbf16>
    %c0_1 = arith.constant 0 : index
    %c0_2 = arith.constant 0 : index
    %2 = vector.load %arg2[%c0_1, %c0_2] : memref<32x128xbf16, #tpu.memory_space<vmem>>, vector<32x128xbf16>
    %cst = arith.constant dense<0.000000e+00> : vector<64x128xf32>
    %3 = tpu.matmul %1, %2, %cst {dimension_numbers = #tpu.dot_dimension_numbers<[1], [0], [0], [1], [0, 0, 1, 1], [], []>} : vector<64x32xbf16>, vector<32x128xbf16>, vector<64x128xf32> -> vector<64x128xf32>
    %c0_3 = arith.constant 0 : index
    %c0_4 = arith.constant 0 : index
    %4 = vector.load %arg3[%c0_3, %c0_4] : memref<1x128xf32, #tpu.memory_space<vmem>>, vector<1x128xf32>
    %5 = vector.broadcast %4 : vector<1x128xf32> to vector<64x128xf32>
    %6 = arith.addf %3, %5 : vector<64x128xf32>
    %7 = arith.negf %6 : vector<64x128xf32>
    %8 = math.exp %7 : vector<64x128xf32>
    %cst_5 = arith.constant 1.000000e+00 : f32
    %9 = vector.broadcast %cst_5 : f32 to vector<64x128xf32>
    %10 = arith.addf %9, %8 : vector<64x128xf32>
    %11 = arith.divf %9, %10 : vector<64x128xf32>
    %c0_6 = arith.constant 0 : index
    %c0_7 = arith.constant 0 : index
    %12 = vector.load %arg4[%c0_6, %c0_7] : memref<64x128xf32, #tpu.memory_space<vmem>>, vector<64x128xf32>
    tpu.vector_store %arg4[%c0_6, %c0_7], %11 {strides = array<i32>} : memref<64x128xf32, #tpu.memory_space<vmem>>, vector<64x128xf32>,
    return
  }
  func.func @transform_0(%arg0: i32) -> (i32, i32) {
    %c0_i32 = arith.constant 0 : i32
    %c0_i32_0 = arith.constant 0 : i32
    return %arg0, %c0_i32 : i32, i32
  }
  func.func @transform_1(%arg0: i32) -> (i32, i32) {
    %c0_i32 = arith.constant 0 : i32
    %c0_i32_0 = arith.constant 0 : i32
    %c0_i32_1 = arith.constant 0 : i32
    return %c0_i32, %c0_i32_0 : i32, i32
  }
  func.func @transform_2(%arg0: i32) -> (i32, i32) {
    %c0_i32 = arith.constant 0 : i32
    %c0_i32_0 = arith.constant 0 : i32
    %c0_i32_1 = arith.constant 0 : i32
    return %c0_i32, %c0_i32_0 : i32, i32
  }
  func.func @transform_3(%arg0: i32) -> (i32, i32) {
    %c0_i32 = arith.constant 0 : i32
    %c0_i32_0 = arith.constant 0 : i32
    return %arg0, %c0_i32 : i32, i32
  }
}

</mosaic_0001>

<llo_original>
// kernel: pallas_predict.1
$region0: #{pallas_predict.1}
  #allocation0 [shape = 'u32[]', space=smem, size = 0x4, offset = 0x4, fixed_abs, tag = 'smem constant byte address 0x4 - core index']
  #allocation1 [shape = 'u32[144,128]{1,0:T(1,128)}', space=vmem, size = 0x12000, scoped, tag = 'internal scratch']
  %s0 = inlined_call_operand.vmem [shape: f32[64,32], index: 0, kind: input, shape index: {}]
  %s1 = inlined_call_operand.vmem [shape: bf16[32,128], index: 1, kind: input, shape index: {}]
  %s2 = inlined_call_operand.vmem [shape: f32[1,128], index: 2, kind: input, shape index: {}]
  %s3 = inlined_call_operand.vmem [shape: f32[64,128], index: 3, kind: output, shape index: {}]
  %s4 = sld [smem:[#allocation0]]
  $region22: #{pallas_predict.1} parent=0
    _
  %s6 = ssub.s32 1, %s4
  %s7 = scalar_select 0, %s6, %s4
  // Predicated region
  $region2: #{pallas_predict.1} parent=0 // pred_check
    _
  $region3: #{pallas_predict.1} parent=0 // pred_check_branch
    %9 = sbr.rel (0) target = $region5
  $region4: #{pallas_predict.1} parent=0 // pred_region
    _
  $region5: #{pallas_predict.1} parent=0 // pred_fallthru
    _
  // Predicated region
  $region6: #{pallas_predict.1} parent=0 // pred_check
    _
  $region7: #{pallas_predict.1} parent=0 // pred_check_branch
    %11 = sbr.rel (0) target = $region9
  $region8: #{pallas_predict.1} parent=0 // pred_region
    _
  $region9: #{pallas_predict.1} parent=0 // pred_fallthru
    _
  // Predicated region
  $region10: #{pallas_predict.1} parent=0 // pred_check
    _
  $region11: #{pallas_predict.1} parent=0 // pred_check_branch
    %13 = sbr.rel (0) target = $region13
  $region12: #{pallas_predict.1} parent=0 // pred_region
    _
  $region13: #{pallas_predict.1} parent=0 // pred_fallthru
    _
  %v15 = vld [vmem:[%s0] sm:$0xff]
  %v16 = vld [vmem:[%s0 + $0x8] sm:$0xff]
  %v17 = vld [vmem:[%s0 + $0x10] sm:$0xff]
  %v18 = vld [vmem:[%s0 + $0x18] sm:$0xff]
  %v19 = vld [vmem:[%s0 + $0x20] sm:$0xff]
  %v20 = vld [vmem:[%s0 + $0x28] sm:$0xff]
  %v21 = vld [vmem:[%s0 + $0x30] sm:$0xff]
  %v22 = vld [vmem:[%s0 + $0x38] sm:$0xff]
  %v23 = vpack.c.bf16 %v16, %v15
  %v24 = vpack.c.bf16 %v18, %v17
  %v25 = vpack.c.bf16 %v20, %v19
  %v26 = vpack.c.bf16 %v22, %v21
  %v27 = vld [vmem:[%s1] sm:$0xf]
  %v28 = vld [vmem:[%s1 + $0x4] sm:$0xf]
  %v29 = vld [vmem:[%s1 + $0x8] sm:$0xf]
  %v30 = vld [vmem:[%s1 + $0xc] sm:$0xf]
  %v31 = vld [vmem:[%s2] sm:$0x1]
  %v33 = vlaneseq
  %v34 = vshrl.u32 %v33, 7
  %v35 = vsub.s32 0, %v34
  %v36 = vrot.slane %v31, %v35
  %v42 = vunpack.c.l.b16 %v27
  %v43 = vunpack.c.l.b16 %v28
  %v44 = vunpack.c.l.b16 %v29
  %v45 = vunpack.c.l.b16 %v30
  %v46 = vpack.c.b16 %v43, %v42
  %v47 = vpack.c.b16 %v45, %v44
  %vm50 = vcmask 261120
  %v52 = vsel %vm50, %v23, 0
  %v55 = vsel %vm50, %v24, 0
  %v58 = vsel %vm50, %v25, 0
  %v61 = vsel %vm50, %v26, 0
  %63 = vmatprep.subr.bf16.mxu0 0
  %64 = vmatpush1.bf16.msra.mxu0 %v46
  %65 = vmatprep.subr.bf16.mxu0 0
  %66 = vmatpush1.bf16.msra.mxu0 %v47
  %67 = vmatprep.subr.bf16.mxu0 0
  %68 = vmatpush1.bf16.msra.mxu0 0
  %69 = vmatprep.subr.bf16.mxu0 0
  %70 = vmatpush1.bf16.msra.mxu0 0
  %71 = vmatprep.subr.bf16.mxu0 0
  %72 = vmatpush1.bf16.msra.mxu0 0
  %73 = vmatprep.subr.bf16.mxu0 0
  %74 = vmatpush1.bf16.msra.mxu0 0
  %75 = vmatprep.subr.bf16.mxu0 0
  %76 = vmatpush1.bf16.msra.mxu0 0
  %77 = vmatprep.subr.bf16.mxu0 0
  %78 = vmatpush1.bf16.msra.mxu0 0
  %79 = vmatprep.subr.bf16.mxu0 0
  %80 = vmatpush1.bf16.msra.mxu0 0
  %81 = vmatprep.subr.bf16.mxu0 0
  %82 = vmatpush1.bf16.msra.mxu0 0
  %83 = vmatprep.subr.bf16.mxu0 0
  %84 = vmatpush1.bf16.msra.mxu0 0
  %85 = vmatprep.subr.bf16.mxu0 0
  %86 = vmatpush1.bf16.msra.mxu0 0
  %87 = vmatprep.subr.bf16.mxu0 0
  %88 = vmatpush1.bf16.msra.mxu0 0
  %89 = vmatprep.subr.bf16.mxu0 0
  %90 = vmatpush1.bf16.msra.mxu0 0
  %91 = vmatprep.subr.bf16.mxu0 0
  %92 = vmatpush1.bf16.msra.mxu0 0
  %93 = vmatprep.subr.bf16.mxu0 0
  %94 = vmatpush1.bf16.msra.mxu0 0
  %95 = vmatprep.mubr.bf16.mxu0 0
  %96 = vmatmul.mubr.bf16.gmra.mrb[0].mxu0 %v52
  %v97 = vpop.f32.mrb[0].mxu0
  %v98 = vadd.f32 %v36, %v97
  %v99 = vpop.f32.mrb[0].mxu0
  %v100 = vpop.f32.mrb[0].mxu0
  %v101 = vadd.f32 %v36, %v100
  %v102 = vpop.f32.mrb[0].mxu0
  %103 = vmatprep.mubr.bf16.mxu0 0
  %104 = vmatmul.mubr.bf16.gmra.mrb[0].mxu0 %v55
  %v105 = vpop.f32.mrb[0].mxu0
  %v106 = vadd.f32 %v36, %v105
  %v107 = vpop.f32.mrb[0].mxu0
  %v108 = vpop.f32.mrb[0].mxu0
  %v109 = vadd.f32 %v36, %v108
  %v110 = vpop.f32.mrb[0].mxu0
  %111 = vmatprep.mubr.bf16.mxu0 0
  %112 = vmatmul.mubr.bf16.gmra.mrb[0].mxu0 %v58
  %v113 = vpop.f32.mrb[0].mxu0
  %v114 = vadd.f32 %v36, %v113
  %v115 = vpop.f32.mrb[0].mxu0
  %v116 = vpop.f32.mrb[0].mxu0
  %v117 = vadd.f32 %v36, %v116
  %v118 = vpop.f32.mrb[0].mxu0
  %119 = vmatprep.mubr.bf16.mxu0 0
  %120 = vmatmul.mubr.bf16.gmra.mrb[0].mxu0 %v61
  %v121 = vpop.f32.mrb[0].mxu0
  %v122 = vadd.f32 %v36, %v121
  %v123 = vpop.f32.mrb[0].mxu0
  %v124 = vpop.f32.mrb[0].mxu0
  %v125 = vadd.f32 %v36, %v124
  %v126 = vpop.f32.mrb[0].mxu0
  %127 = vdwg.mxu0
  %v128 = vxor.u32 %v98, 2147483648
  %v129 = vxor.u32 %v101, 2147483648
  %v130 = vxor.u32 %v106, 2147483648
  %v131 = vxor.u32 %v109, 2147483648
  %v132 = vxor.u32 %v114, 2147483648
  %v133 = vxor.u32 %v117, 2147483648
  %v134 = vxor.u32 %v122, 2147483648
  %v135 = vxor.u32 %v125, 2147483648
  %v136 = vmul.f32 %v128, 1.442695
  %v137 = vpow.pop %v136
  %v138 = vmul.f32 %v129, 1.442695
  %v139 = vpow.pop %v138
  %v140 = vmul.f32 %v130, 1.442695
  %v141 = vpow.pop %v140
  %v142 = vmul.f32 %v131, 1.442695
  %v143 = vpow.pop %v142
  %v144 = vmul.f32 %v132, 1.442695
  %v145 = vpow.pop %v144
  %v146 = vmul.f32 %v133, 1.442695
  %v147 = vpow.pop %v146
  %v148 = vmul.f32 %v134, 1.442695
  %v149 = vpow.pop %v148
  %v150 = vmul.f32 %v135, 1.442695
  %v151 = vpow.pop %v150
  %v152 = vadd.f32 %v137, 1.0
  %v153 = vadd.f32 %v139, 1.0
  %v154 = vadd.f32 %v141, 1.0
  %v155 = vadd.f32 %v143, 1.0
  %v156 = vadd.f32 %v145, 1.0
  %v157 = vadd.f32 %v147, 1.0
  %v158 = vadd.f32 %v149, 1.0
  %v159 = vadd.f32 %v151, 1.0
  %v160 = vrcp.pop %v152
  %v161 = vmul.f32 1.0, %v160
  %v162 = vrcp.pop %v153
  %v163 = vmul.f32 1.0, %v162
  %v164 = vrcp.pop %v154
  %v165 = vmul.f32 1.0, %v164
  %v166 = vrcp.pop %v155
  %v167 = vmul.f32 1.0, %v166
  %v168 = vrcp.pop %v156
  %v169 = vmul.f32 1.0, %v168
  %v170 = vrcp.pop %v157
  %v171 = vmul.f32 1.0, %v170
  %v172 = vrcp.pop %v158
  %v173 = vmul.f32 1.0, %v172
  %v174 = vrcp.pop %v159
  %v175 = vmul.f32 1.0, %v174
  %176 = vst [vmem:[%s3] sm:$0xff] %v161
  %177 = vst [vmem:[%s3 + $0x8] sm:$0xff] %v163
  %178 = vst [vmem:[%s3 + $0x10] sm:$0xff] %v165
  %179 = vst [vmem:[%s3 + $0x18] sm:$0xff] %v167
  %180 = vst [vmem:[%s3 + $0x20] sm:$0xff] %v169
  %181 = vst [vmem:[%s3 + $0x28] sm:$0xff] %v171
  %182 = vst [vmem:[%s3 + $0x30] sm:$0xff] %v173
  %183 = vst [vmem:[%s3 + $0x38] sm:$0xff] %v175
  // Predicated region
  $region14: #{pallas_predict.1} parent=0 // pred_check
    _
  $region15: #{pallas_predict.1} parent=0 // pred_check_branch
    %185 = sbr.rel (0) target = $region17
  $region16: #{pallas_predict.1} parent=0 // pred_region
    _
  $region17: #{pallas_predict.1} parent=0 // pred_fallthru
    _
  // Predicated region
  $region18: #{pallas_predict.1} parent=0 // pred_check
    _
  $region19: #{pallas_predict.1} parent=0 // pred_check_branch
    %187 = sbr.rel (0) target = $region21
  $region20: #{pallas_predict.1} parent=0 // pred_region
    _
  $region21: #{pallas_predict.1} parent=0 // pred_fallthru
    _

</llo_original>
